<compile_context>
chip_gen: v5e
topology: v5e:2x2
jax: 0.10.0
libtpu: 0.0.40
codegen_flags: <defaults>
</compile_context>

<pallas_src>
import jax
import jax.numpy as jnp
import numpy as np
from jax.experimental import pallas as pl
from jax.experimental.pallas import tpu as pltpu

LANE = 128


def _round_up(n, m):
    return ((n + m - 1) // m) * m


def mfmlp_kernel(x_ref, wa_ref, ba_ref, wb_ref, bb_ref, out_ref, latent_ref):
    """Single step: folded seq1 matmul, then folded seq2 matmul."""
    lat = jnp.dot(x_ref[...], wa_ref[...],
                  preferred_element_type=jnp.float32) + ba_ref[...]
    latent_ref[...] = lat
    out_ref[...] = jnp.dot(lat, wb_ref[...],
                           preferred_element_type=jnp.float32) + bb_ref[...]


@jax.jit
def mfmlp_forward(x, W1, b1, W2, b2, s1, t1, W3, b3, s2, t2, W4, b4):
    b, c, d = x.shape
    n_c = W4.shape[1]
    L = c * 10                      # latent width (c_in * 10)
    Lp = _round_up(L, LANE)         # lane-dense latent width
    Np = _round_up(n_c, LANE)       # lane-dense logits width
    f32 = jnp.float32

    # (b, c, d) -> (b, c*d): contiguous reshape, no transpose / extra HBM pass.
    x_flat = x.reshape(b, c * d).astype(f32)

    # ---- fold seq1: Linear(d,5) -> Linear(5,10) -> [LeakyReLU slope=1] ->
    #                 [Dropout eval] -> BatchNorm1d(10) inference affine ----
    Wa = (W1 @ W2) * s1                         # (d, 10)
    ba = ((b1 @ W2) + b2) * s1 + t1             # (1, 10)
    # Same affine per channel -> block-diagonal so latent lands directly in the
    # PyTorch (b, c*10) layout (channel-major column blocks).
    Wa_block = jnp.kron(jnp.eye(c, dtype=f32), Wa)        # (c*d, c*10)
    ba_tile = jnp.tile(ba, (1, c))                        # (1, c*10)
    Wa_pad = jnp.zeros((c * d, Lp), f32).at[:, :L].set(Wa_block)
    ba_pad = jnp.zeros((1, Lp), f32).at[:, :L].set(ba_tile)

    # ---- fold seq2: Linear(c*10,20) -> [LeakyReLU slope=1] -> [Dropout eval] ->
    #                 BatchNorm1d(20) inference affine -> Linear(20, n_c) ----
    Wb = (W3 * s2) @ W4                          # (c*10, n_c)
    bb = (b3 * s2 + t2) @ W4 + b4                # (1, n_c)
    Wb_pad = jnp.zeros((Lp, Np), f32).at[:L, :n_c].set(Wb)
    bb_pad = jnp.zeros((1, Np), f32).at[:, :n_c].set(bb)

    vmem = lambda: pl.BlockSpec(memory_space=pltpu.MemorySpace.VMEM)
    flops = 2 * b * (c * d) * Lp + 2 * b * Lp * Np
    bytes_accessed = 4 * (x_flat.size + Wa_pad.size + ba_pad.size
                          + Wb_pad.size + bb_pad.size + b * Np + b * Lp)

    out_pad, latent_pad = pl.pallas_call(
        mfmlp_kernel,
        out_shape=(
            jax.ShapeDtypeStruct((b, Np), f32),   # padded logits
            jax.ShapeDtypeStruct((b, Lp), f32),   # padded latent_base
        ),
        in_specs=[vmem() for _ in range(5)],
        out_specs=(vmem(), vmem()),
        cost_estimate=pl.CostEstimate(flops=flops, transcendentals=0,
                                      bytes_accessed=bytes_accessed),
    )(x_flat, Wa_pad, ba_pad, Wb_pad, bb_pad)

    return out_pad[:, :n_c], latent_pad[:, :L]


def mfmlp_reference(x, W1, b1, W2, b2, s1, t1, W3, b3, s2, t2, W4, b4):
    b, c, d = x.shape
    h = jnp.einsum('bcd,de->bce', x, W1) + b1
    h = jnp.einsum('bce,ef->bcf', h, W2) + b2
    # LeakyReLU(negative_slope=True==1.0) is identity; Dropout (eval) identity.
    h = h * s1 + t1
    latent = h.reshape(b, c * 10)
    z = latent @ W3 + b3
    z = z * s2 + t2
    out = z @ W4 + b4
    return out, latent


def make_params(key, d_in, c_in, n_c):
    """Deterministic synthetic parameters (weights stored as (in, out) = W.T)."""
    ks = jax.random.split(key, 20)
    f32 = jnp.float32
    eps = 1e-5

    W1 = (jax.random.normal(ks[0], (d_in, 5)) * 0.2).astype(f32)
    b1 = (jax.random.normal(ks[1], (1, 5)) * 0.1).astype(f32)
    W2 = (jax.random.normal(ks[2], (5, 10)) * 0.2).astype(f32)
    b2 = (jax.random.normal(ks[3], (1, 10)) * 0.1).astype(f32)

    g1 = (1.0 + 0.1 * jax.random.normal(ks[4], (10,))).astype(f32)
    be1 = (0.1 * jax.random.normal(ks[5], (10,))).astype(f32)
    m1 = (0.1 * jax.random.normal(ks[6], (10,))).astype(f32)
    v1 = (1.0 + jnp.abs(0.1 * jax.random.normal(ks[7], (10,)))).astype(f32)
    s1 = (g1 / jnp.sqrt(v1 + eps)).reshape(1, 10)
    t1 = (be1 - m1 * s1.ravel()).reshape(1, 10)

    W3 = (jax.random.normal(ks[8], (c_in * 10, 20)) * 0.2).astype(f32)
    b3 = (jax.random.normal(ks[9], (1, 20)) * 0.1).astype(f32)

    g2 = (1.0 + 0.1 * jax.random.normal(ks[10], (20,))).astype(f32)
    be2 = (0.1 * jax.random.normal(ks[11], (20,))).astype(f32)
    m2 = (0.1 * jax.random.normal(ks[12], (20,))).astype(f32)
    v2 = (1.0 + jnp.abs(0.1 * jax.random.normal(ks[13], (20,)))).astype(f32)
    s2 = (g2 / jnp.sqrt(v2 + eps)).reshape(1, 20)
    t2 = (be2 - m2 * s2.ravel()).reshape(1, 20)

    W4 = (jax.random.normal(ks[14], (20, n_c)) * 0.2).astype(f32)
    b4 = (jax.random.normal(ks[15], (1, n_c)) * 0.1).astype(f32)

    return (W1, b1, W2, b2, s1, t1, W3, b3, s2, t2, W4, b4)


if __name__ == "__main__":
    d_in, c_in, n_c = 16, 4, 3
    batch = 8

    key = jax.random.PRNGKey(0)
    kx, kp = jax.random.split(key)
    x = jax.random.normal(kx, (batch, c_in, d_in), dtype=jnp.float32)
    params = make_params(kp, d_in, c_in, n_c)

    out, latent = mfmlp_forward(x, *params)
    out = jax.block_until_ready(out)
    latent = jax.block_until_ready(latent)

    out_ref, latent_ref = mfmlp_reference(x, *params)
    assert out.shape == (batch, n_c)
    assert latent.shape == (batch, c_in * 10)
    np.testing.assert_allclose(np.asarray(out), np.asarray(out_ref),
                               atol=2e-5, rtol=2e-5)
    np.testing.assert_allclose(np.asarray(latent), np.asarray(latent_ref),
                               atol=2e-5, rtol=2e-5)

    print("KERNEL_OK")
</pallas_src>

<mosaic_0001>
module attributes {stable_mosaic.version = 11 : i64} {
  func.func @mfmlp_kernel(%arg0: memref<8x64xf32, #tpu.memory_space<vmem>>, %arg1: memref<64x128xf32, #tpu.memory_space<vmem>>, %arg2: memref<1x128xf32, #tpu.memory_space<vmem>>, %arg3: memref<128x128xf32, #tpu.memory_space<vmem>>, %arg4: memref<1x128xf32, #tpu.memory_space<vmem>>, %arg5: memref<8x128xf32, #tpu.memory_space<vmem>>, %arg6: memref<8x128xf32, #tpu.memory_space<vmem>>) attributes {dimension_semantics = [], scalar_prefetch = 0 : i64, scratch_operands = 0 : i64, tpu.core_type = #tpu.core_type<tc>} {
    %c0 = arith.constant 0 : index
    %c0_0 = arith.constant 0 : index
    %0 = vector.load %arg0[%c0, %c0_0] : memref<8x64xf32, #tpu.memory_space<vmem>>, vector<8x64xf32>
    %c0_1 = arith.constant 0 : index
    %c0_2 = arith.constant 0 : index
    %1 = vector.load %arg1[%c0_1, %c0_2] : memref<64x128xf32, #tpu.memory_space<vmem>>, vector<64x128xf32>
    %cst = arith.constant dense<0.000000e+00> : vector<8x128xf32>
    %2 = tpu.matmul %0, %1, %cst {dimension_numbers = #tpu.dot_dimension_numbers<[1], [0], [0], [1], [0, 0, 1, 1], [], []>} : vector<8x64xf32>, vector<64x128xf32>, vector<8x128xf32> -> vector<8x128xf32>
    %c0_3 = arith.constant 0 : index
    %c0_4 = arith.constant 0 : index
    %3 = vector.load %arg2[%c0_3, %c0_4] : memref<1x128xf32, #tpu.memory_space<vmem>>, vector<1x128xf32>
    %4 = vector.broadcast %3 : vector<1x128xf32> to vector<8x128xf32>
    %5 = arith.addf %2, %4 : vector<8x128xf32>
    %c0_5 = arith.constant 0 : index
    %c0_6 = arith.constant 0 : index
    %6 = vector.load %arg6[%c0_5, %c0_6] : memref<8x128xf32, #tpu.memory_space<vmem>>, vector<8x128xf32>
    tpu.vector_store %arg6[%c0_5, %c0_6], %5 {strides = array<i32>} : memref<8x128xf32, #tpu.memory_space<vmem>>, vector<8x128xf32>,
    %c0_7 = arith.constant 0 : index
    %c0_8 = arith.constant 0 : index
    %7 = vector.load %arg3[%c0_7, %c0_8] : memref<128x128xf32, #tpu.memory_space<vmem>>, vector<128x128xf32>
    %cst_9 = arith.constant dense<0.000000e+00> : vector<8x128xf32>
    %8 = tpu.matmul %5, %7, %cst_9 {dimension_numbers = #tpu.dot_dimension_numbers<[1], [0], [0], [1], [0, 0, 1, 1], [], []>} : vector<8x128xf32>, vector<128x128xf32>, vector<8x128xf32> -> vector<8x128xf32>
    %c0_10 = arith.constant 0 : index
    %c0_11 = arith.constant 0 : index
    %9 = vector.load %arg4[%c0_10, %c0_11] : memref<1x128xf32, #tpu.memory_space<vmem>>, vector<1x128xf32>
    %10 = vector.broadcast %9 : vector<1x128xf32> to vector<8x128xf32>
    %11 = arith.addf %8, %10 : vector<8x128xf32>
    %c0_12 = arith.constant 0 : index
    %c0_13 = arith.constant 0 : index
    %12 = vector.load %arg5[%c0_12, %c0_13] : memref<8x128xf32, #tpu.memory_space<vmem>>, vector<8x128xf32>
    tpu.vector_store %arg5[%c0_12, %c0_13], %11 {strides = array<i32>} : memref<8x128xf32, #tpu.memory_space<vmem>>, vector<8x128xf32>,
    return
  }
}

</mosaic_0001>

<llo_original>
// kernel: mfmlp_forward.1
$region0: #{mfmlp_forward.1}
  #allocation0 [shape = 'u32[]', space=smem, size = 0x4, offset = 0x4, fixed_abs, tag = 'smem constant byte address 0x4 - core index']
  #allocation1 [shape = 'u32[72,128]{1,0:T(1,128)}', space=vmem, size = 0x9000, scoped, tag = 'internal scratch']
  %s0 = inlined_call_operand.vmem [shape: f32[8,64], index: 0, kind: input, shape index: {}]
  %s1 = inlined_call_operand.vmem [shape: f32[64,128], index: 1, kind: input, shape index: {}]
  %s2 = inlined_call_operand.vmem [shape: f32[1,128], index: 2, kind: input, shape index: {}]
  %s3 = inlined_call_operand.vmem [shape: f32[128,128], index: 3, kind: input, shape index: {}]
  %s4 = inlined_call_operand.vmem [shape: f32[1,128], index: 4, kind: input, shape index: {}]
  %s5 = inlined_call_operand.vmem [shape: f32[8,128], index: 5, kind: output, shape index: {0}]
  %s6 = inlined_call_operand.hbm [shape: f32[8,128], index: 6, kind: output, shape index: {1}]
  %7 = xla_tuple %s5, %s6
  %s8 = sld [smem:[#allocation0]]
  $region38: #{mfmlp_forward.1} parent=0
    _
  %s10 = ssub.s32 1, %s8
  %s11 = scalar_select 0, %s10, %s8
  $region1: #{mfmlp_forward.1} parent=0
    #allocation2 [shape = 'u8[4096]{0}', space=vmem, size = 0x1000, scoped, tag = 'output window, operand 1, single buffered']
    #allocation3 [shape = 's32[1]{0}', space=sflag, size = 0x4, scoped, tag = 'scoped memory for mfmlp_forward.1']
    %12 = vsyncpa [#allocation3], 0
    // Predicated region
    $region2: #{mfmlp_forward.1} parent=1 // pred_check
      _
    $region3: #{mfmlp_forward.1} parent=1 // pred_check_branch
      %14 = sbr.rel (0) target = $region5
    $region4: #{mfmlp_forward.1} parent=1 // pred_region
      _
    $region5: #{mfmlp_forward.1} parent=1 // pred_fallthru
      _
    // Predicated region
    $region6: #{mfmlp_forward.1} parent=1 // pred_check
      _
    $region7: #{mfmlp_forward.1} parent=1 // pred_check_branch
      %16 = sbr.rel (0) target = $region9
    $region8: #{mfmlp_forward.1} parent=1 // pred_region
      _
    $region9: #{mfmlp_forward.1} parent=1 // pred_fallthru
      _
    // Predicated region
    $region10: #{mfmlp_forward.1} parent=1 // pred_check
      _
    $region11: #{mfmlp_forward.1} parent=1 // pred_check_branch
      %18 = sbr.rel (0) target = $region13
    $region12: #{mfmlp_forward.1} parent=1 // pred_region
      _
    $region13: #{mfmlp_forward.1} parent=1 // pred_fallthru
      _
    // Predicated region
    $region14: #{mfmlp_forward.1} parent=1 // pred_check
      _
    $region15: #{mfmlp_forward.1} parent=1 // pred_check_branch
      %20 = sbr.rel (0) target = $region17
    $region16: #{mfmlp_forward.1} parent=1 // pred_region
      _
    $region17: #{mfmlp_forward.1} parent=1 // pred_fallthru
      _
    // Predicated region
    $region18: #{mfmlp_forward.1} parent=1 // pred_check
      _
    $region19: #{mfmlp_forward.1} parent=1 // pred_check_branch
      %22 = sbr.rel (0) target = $region21
    $region20: #{mfmlp_forward.1} parent=1 // pred_region
      _
    $region21: #{mfmlp_forward.1} parent=1 // pred_fallthru
      _
    %v23 = vld [vmem:[%s0] sm:$0xff]
    %v24 = vld [vmem:[%s1] sm:$0xff]
    %v25 = vld [vmem:[%s1 + $0x8] sm:$0xff]
    %v26 = vld [vmem:[%s1 + $0x10] sm:$0xff]
    %v27 = vld [vmem:[%s1 + $0x18] sm:$0xff]
    %v28 = vld [vmem:[%s1 + $0x20] sm:$0xff]
    %v29 = vld [vmem:[%s1 + $0x28] sm:$0xff]
    %v30 = vld [vmem:[%s1 + $0x30] sm:$0xff]
    %v31 = vld [vmem:[%s1 + $0x38] sm:$0xff]
    %v32 = vld [vmem:[%s2] sm:$0x1]
    %v34 = vperm.slane %v32, 0
    %vm36 = vcmask 523264
    %v38 = vsel %vm36, %v23, 0
    %40 = vmatpush.msra.mxu0 0.0
    %41 = vmatpush.msra.mxu0 0.0
    %42 = vmatpush.msra.mxu0 0.0
    %43 = vmatpush.msra.mxu0 0.0
    %44 = vmatpush.msra.mxu0 0.0
    %45 = vmatpush.msra.mxu0 0.0
    %46 = vmatpush.msra.mxu0 0.0
    %47 = vmatpush.msra.mxu0 0.0
    %48 = vmatpush.msra.mxu0 %v31
    %49 = vmatpush.msra.mxu0 %v30
    %50 = vmatpush.msra.mxu0 %v29
    %51 = vmatpush.msra.mxu0 %v28
    %52 = vmatpush.msra.mxu0 %v27
    %53 = vmatpush.msra.mxu0 %v26
    %54 = vmatpush.msra.mxu0 %v25
    %55 = vmatpush.msra.mxu0 %v24
    %56 = vmatmul.f32.gmra.mxu0 %v38
    %v57 = vpop.f32.mrf.mxu0
    %v58 = vadd.f32 %v34, %v57
    %59 = vdwg.mxu0
    %60 = vst [vmem:[#allocation2] sm:$0xff] %v58
    %v61 = vld [vmem:[%s3] sm:$0xff]
    %v62 = vld [vmem:[%s3 + $0x8] sm:$0xff]
    %v63 = vld [vmem:[%s3 + $0x10] sm:$0xff]
    %v64 = vld [vmem:[%s3 + $0x18] sm:$0xff]
    %v65 = vld [vmem:[%s3 + $0x20] sm:$0xff]
    %v66 = vld [vmem:[%s3 + $0x28] sm:$0xff]
    %v67 = vld [vmem:[%s3 + $0x30] sm:$0xff]
    %v68 = vld [vmem:[%s3 + $0x38] sm:$0xff]
    %v69 = vld [vmem:[%s3 + $0x40] sm:$0xff]
    %v70 = vld [vmem:[%s3 + $0x48] sm:$0xff]
    %v71 = vld [vmem:[%s3 + $0x50] sm:$0xff]
    %v72 = vld [vmem:[%s3 + $0x58] sm:$0xff]
    %v73 = vld [vmem:[%s3 + $0x60] sm:$0xff]
    %v74 = vld [vmem:[%s3 + $0x68] sm:$0xff]
    %v75 = vld [vmem:[%s3 + $0x70] sm:$0xff]
    %v76 = vld [vmem:[%s3 + $0x78] sm:$0xff]
    %v77 = vld [vmem:[%s4] sm:$0x1]
    %v79 = vperm.slane %v77, 0
    %81 = vmatpush.msra.mxu0 %v76
    %82 = vmatpush.msra.mxu0 %v75
    %83 = vmatpush.msra.mxu0 %v74
    %84 = vmatpush.msra.mxu0 %v73
    %85 = vmatpush.msra.mxu0 %v72
    %86 = vmatpush.msra.mxu0 %v71
    %87 = vmatpush.msra.mxu0 %v70
    %88 = vmatpush.msra.mxu0 %v69
    %89 = vmatpush.msra.mxu0 %v68
    %90 = vmatpush.msra.mxu0 %v67
    %91 = vmatpush.msra.mxu0 %v66
    %92 = vmatpush.msra.mxu0 %v65
    %93 = vmatpush.msra.mxu0 %v64
    %94 = vmatpush.msra.mxu0 %v63
    %95 = vmatpush.msra.mxu0 %v62
    %96 = vmatpush.msra.mxu0 %v61
    %97 = vmatmul.f32.gmra.mxu0 %v58
    %v98 = vpop.f32.mrf.mxu0
    %v99 = vadd.f32 %v79, %v98
    %100 = vdwg.mxu0
    %101 = vst [vmem:[%s5] sm:$0xff] %v99
    // Predicated region
    $region22: #{mfmlp_forward.1} parent=1 // pred_check
      _
    $region23: #{mfmlp_forward.1} parent=1 // pred_check_branch
      %103 = sbr.rel (0) target = $region25
    $region24: #{mfmlp_forward.1} parent=1 // pred_region
      _
    $region25: #{mfmlp_forward.1} parent=1 // pred_fallthru
      _
    // Predicated region
    $region26: #{mfmlp_forward.1} parent=1 // pred_check
      _
    $region27: #{mfmlp_forward.1} parent=1 // pred_check_branch
      %105 = sbr.rel (0) target = $region29
    $region28: #{mfmlp_forward.1} parent=1 // pred_region
      %107 = vsyncadd [#allocation3], 0
      %s109 = sshll.u32 [#allocation2], 4
      %s110 = int_to_ptr.vmem [resolvable:$true] %s109
      %s111 = sshll.u32 %s6, 4
      %s112 = int_to_ptr.hbm [resolvable:$true] %s111
      %114 = dma.vmem_to_hbm [thread:$0]  %s110, 128, %s112, [#allocation3]
    $region29: #{mfmlp_forward.1} parent=1 // pred_fallthru
      _
    // Predicated region
    $region30: #{mfmlp_forward.1} parent=1 // pred_check
      _
    $region31: #{mfmlp_forward.1} parent=1 // pred_check_branch
      %116 = sbr.rel (0) target = $region33
    $region32: #{mfmlp_forward.1} parent=1 // pred_region
      _
    $region33: #{mfmlp_forward.1} parent=1 // pred_fallthru
      _
    // Predicated region
    $region34: #{mfmlp_forward.1} parent=1 // pred_check
      _
    $region35: #{mfmlp_forward.1} parent=1 // pred_check_branch
      %118 = sbr.rel (0) target = $region37
    $region36: #{mfmlp_forward.1} parent=1 // pred_region
      %120 = dma.done [#allocation3], 128
    $region37: #{mfmlp_forward.1} parent=1 // pred_fallthru
      _
    %121 = vsyncpa [#allocation3], 1

</llo_original>
